<compile_context>
chip_gen: v6e
topology: v6e:2x2x1
jax: 0.10.0
libtpu: 0.0.40
codegen_flags: <defaults>
</compile_context>

<pallas_src>
import math
import functools

import numpy as np
import jax
import jax.numpy as jnp
from jax.experimental import pallas as pl
from jax.experimental.pallas import tpu as pltpu


# ----------------------------------------------------------------------------
# helpers
# ----------------------------------------------------------------------------

def _round_up(x, m):
    return ((x + m - 1) // m) * m


def _itemsize(dt):
    return np.dtype(dt).itemsize


def _pad_to(x, shape):
    pads = [(0, t - s) for s, t in zip(x.shape, shape)]
    if all(p == (0, 0) for p in pads):
        return x
    return jnp.pad(x, pads)


def _choose_tile(padded, desired):
    """Largest multiple of 128 <= desired that divides `padded` (padded % 128 == 0)."""
    if padded <= desired:
        return padded
    t = (desired // 128) * 128
    while t > 128:
        if padded % t == 0:
            return t
        t -= 128
    return 128


def _spec(block_shape, index_map, buffering=None):
    """BlockSpec, optionally with deeper multi-buffering when supported."""
    if buffering is not None and buffering > 2 and hasattr(pl, "Buffered"):
        try:
            return pl.BlockSpec(block_shape, index_map,
                                pipeline_mode=pl.Buffered(buffering))
        except TypeError:
            pass
    return pl.BlockSpec(block_shape, index_map)


def _vmem_limit(needed_bytes):
    # enough headroom, but never above what v7x (64 MiB physical) can grant.
    return int(min(max(needed_bytes + (8 << 20), 32 << 20), 60 << 20))


# ----------------------------------------------------------------------------
# kernels
# ----------------------------------------------------------------------------

def _mm_ktiled_kernel(a_ref, b_ref, o_ref, acc_ref, *, compute_dtype):
    """One (i, j, k) grid step of O = A @ B with f32 accumulation (no bias)."""
    k = pl.program_id(2)

    @pl.when(k == 0)
    def _():
        acc_ref[...] = jnp.zeros_like(acc_ref)

    a = a_ref[...]
    if a.dtype != compute_dtype:
        a = a.astype(compute_dtype)          # in-kernel cast, hidden under MXU
    b = b_ref[...]
    if b.dtype != compute_dtype:
        b = b.astype(compute_dtype)
    acc_ref[...] += jnp.dot(a, b, preferred_element_type=jnp.float32)

    @pl.when(k == pl.num_programs(2) - 1)
    def _():
        o_ref[...] = acc_ref[...].astype(o_ref.dtype)


def _mm_bias_ktiled_kernel(a_ref, b_ref, bias_ref, o_ref, acc_ref, *, compute_dtype):
    """One (i, j, k) grid step of O = A @ B + bias with f32 accumulation."""
    k = pl.program_id(2)

    @pl.when(k == 0)
    def _():
        acc_ref[...] = jnp.zeros_like(acc_ref)

    a = a_ref[...]
    if a.dtype != compute_dtype:
        a = a.astype(compute_dtype)
    b = b_ref[...]
    if b.dtype != compute_dtype:
        b = b.astype(compute_dtype)
    acc_ref[...] += jnp.dot(a, b, preferred_element_type=jnp.float32)

    @pl.when(k == pl.num_programs(2) - 1)
    def _():
        o_ref[...] = (acc_ref[...] + bias_ref[...]).astype(o_ref.dtype)


def _mm_bias_fullk_kernel(a_ref, b_ref, bias_ref, o_ref, *, compute_dtype):
    """One row-tile of O = A @ B + bias with B (and bias) fully VMEM-resident."""
    a = a_ref[...]
    if a.dtype != compute_dtype:
        a = a.astype(compute_dtype)
    b = b_ref[...]
    if b.dtype != compute_dtype:
        b = b.astype(compute_dtype)
    acc = jnp.dot(a, b, preferred_element_type=jnp.float32)
    o_ref[...] = (acc + bias_ref[...]).astype(o_ref.dtype)


# ----------------------------------------------------------------------------
# pallas_call wrappers
# ----------------------------------------------------------------------------

def _matmul_ktiled(a, b, bias2d, *, tm, tn, tk, out_dtype, compute_dtype,
                   a_buffering=2):
    """A:[M,K] @ B:[K,N] (+ bias2d:[1,N]) -> [M,N], dims already tile-aligned."""
    M, K = a.shape
    K2, N = b.shape
    assert K == K2
    assert M % tm == 0 and N % tn == 0 and K % tk == 0

    vmem_needed = (max(a_buffering, 2) * tm * tk * _itemsize(a.dtype)
                   + 2 * tk * tn * _itemsize(b.dtype)
                   + 2 * tm * tn * _itemsize(out_dtype)
                   + tm * tn * 4)                       # f32 accumulator scratch

    in_specs = [
        _spec((tm, tk), lambda i, j, k: (i, k), buffering=a_buffering),
        _spec((tk, tn), lambda i, j, k: (k, j)),
    ]
    operands = [a, b]
    bias_bytes = 0
    if bias2d is not None:
        assert bias2d.shape == (1, N)
        in_specs.append(_spec((1, tn), lambda i, j, k: (0, j)))
        operands.append(bias2d)
        vmem_needed += 2 * tn * 4
        bias_bytes = bias2d.size * _itemsize(bias2d.dtype)
        kernel = functools.partial(_mm_bias_ktiled_kernel, compute_dtype=compute_dtype)
    else:
        kernel = functools.partial(_mm_ktiled_kernel, compute_dtype=compute_dtype)

    cost = pl.CostEstimate(
        flops=2 * M * N * K, transcendentals=0,
        bytes_accessed=(a.size * _itemsize(a.dtype) + b.size * _itemsize(b.dtype)
                        + bias_bytes + M * N * _itemsize(out_dtype)))

    return pl.pallas_call(
        kernel,
        out_shape=jax.ShapeDtypeStruct((M, N), out_dtype),
        grid_spec=pltpu.PrefetchScalarGridSpec(
            num_scalar_prefetch=0,
            grid=(M // tm, N // tn, K // tk),
            in_specs=in_specs,
            out_specs=pl.BlockSpec((tm, tn), lambda i, j, k: (i, j)),
            scratch_shapes=[pltpu.VMEM((tm, tn), jnp.float32)],
        ),
        compiler_params=pltpu.CompilerParams(
            dimension_semantics=("parallel", "parallel", "arbitrary"),
            vmem_limit_bytes=_vmem_limit(vmem_needed),
        ),
        cost_estimate=cost,
    )(*operands)


def _matmul_bias_fullk(a, b, bias2d, *, tm, out_dtype, compute_dtype):
    """A:[M,K] @ B:[K,N] + bias with B fully VMEM-resident (fetched once)."""
    M, K = a.shape
    K2, N = b.shape
    assert K == K2 and bias2d.shape == (1, N) and M % tm == 0

    vmem_needed = (2 * tm * K * _itemsize(a.dtype)
                   + 2 * K * N * _itemsize(b.dtype)
                   + 2 * N * 4
                   + 2 * tm * N * _itemsize(out_dtype))

    cost = pl.CostEstimate(
        flops=2 * M * N * K, transcendentals=0,
        bytes_accessed=(a.size * _itemsize(a.dtype) + b.size * _itemsize(b.dtype)
                        + N * 4 + M * N * _itemsize(out_dtype)))

    return pl.pallas_call(
        functools.partial(_mm_bias_fullk_kernel, compute_dtype=compute_dtype),
        out_shape=jax.ShapeDtypeStruct((M, N), out_dtype),
        grid_spec=pltpu.PrefetchScalarGridSpec(
            num_scalar_prefetch=0,
            grid=(M // tm,),
            in_specs=[
                pl.BlockSpec((tm, K), lambda i: (i, 0)),
                pl.BlockSpec((K, N), lambda i: (0, 0)),   # constant index -> fetched once
                pl.BlockSpec((1, N), lambda i: (0, 0)),
            ],
            out_specs=pl.BlockSpec((tm, N), lambda i: (i, 0)),
        ),
        compiler_params=pltpu.CompilerParams(
            dimension_semantics=("parallel",),
            vmem_limit_bytes=_vmem_limit(vmem_needed),
        ),
        cost_estimate=cost,
    )(a, b, bias2d)


# ----------------------------------------------------------------------------
# GCN layer forward
# ----------------------------------------------------------------------------

def graph_convolution(x, adj, weight, bias=None, *,
                      tile_nodes=512, tile_fin=512, tile_fout=256,
                      compute_dtype=jnp.float32,
                      resident_support_bytes=8 << 20,
                      adj_buffering=3):
    """GCN layer forward: adj @ (x @ weight) + bias.

    x:      [N, F_in]     node features
    adj:    [N, N]        dense adjacency / propagation matrix
    weight: [F_in, F_out]
    bias:   [F_out] or None
    """
    N, F_in = x.shape
    F_in2, F_out = weight.shape
    assert F_in == F_in2 and adj.shape == (N, N)

    # padded (lane-dense) sizes; padding is a no-op when already aligned.
    Np = _round_up(N, 128)
    Fip = _round_up(F_in, 128)
    Fop = _round_up(F_out, 128)

    # tiles: >= 2 row tiles when possible (v7x megacore), lane-dense features.
    t_fin = _choose_tile(Fip, tile_fin)
    t_fout = _choose_tile(Fop, tile_fout)
    desired_tm = tile_nodes
    if Np >= 256:
        desired_tm = min(desired_tm, Np // 2)
    t_m = _choose_tile(Np, desired_tm)
    t_k_nodes = _choose_tile(Np, tile_nodes)

    # small operands: pad + cast in the wrapper (cheap relative to adj).
    xp = _pad_to(x, (Np, Fip)).astype(compute_dtype)
    wp = _pad_to(weight, (Fip, Fop)).astype(compute_dtype)
    # adj: pad only if needed, NO wrapper cast (per-tile cast happens in-kernel,
    # avoiding an extra O(N^2) HBM pass).  Pass a bf16 adj upstream to also
    # halve the dominant HBM stream.
    adjp = _pad_to(adj, (Np, Np))

    if bias is None:
        biasp = jnp.zeros((1, Fop), jnp.float32)
    else:
        biasp = _pad_to(bias.reshape(1, F_out).astype(jnp.float32), (1, Fop))

    # support = X @ W, computed exactly once with the bias-less kernel.
    support = _matmul_ktiled(xp, wp, None,
                             tm=t_m, tn=t_fout, tk=t_fin,
                             out_dtype=compute_dtype, compute_dtype=compute_dtype)

    # output = adj @ support + bias
    support_bytes = Np * Fop * _itemsize(compute_dtype)
    use_resident = support_bytes <= resident_support_bytes
    if use_resident:
        def _fullk_budget(tm_):
            return (2 * tm_ * Np * _itemsize(adjp.dtype)
                    + 2 * Np * Fop * _itemsize(compute_dtype)
                    + 2 * Fop * 4
                    + 2 * tm_ * Fop * 4)

        tm_r = t_m
        while _fullk_budget(tm_r) > (40 << 20) and tm_r > 128:
            tm_r = _choose_tile(Np, max(tm_r // 2, 128))
        if _fullk_budget(tm_r) <= (40 << 20):
            out = _matmul_bias_fullk(adjp, support, biasp, tm=tm_r,
                                     out_dtype=jnp.float32,
                                     compute_dtype=compute_dtype)
        else:
            use_resident = False

    if not use_resident:
        out = _matmul_ktiled(adjp, support, biasp,
                             tm=t_m, tn=t_fout, tk=t_k_nodes,
                             out_dtype=jnp.float32, compute_dtype=compute_dtype,
                             a_buffering=adj_buffering)

    return out[:N, :F_out]


# ----------------------------------------------------------------------------
# demo / self-test
# ----------------------------------------------------------------------------

if __name__ == "__main__":
    # Small synthetic problem: N nodes, F_in -> F_out
    N, F_in, F_out = 256, 64, 32

    key = jax.random.PRNGKey(0)
    k_x, k_adj, k_w, k_b = jax.random.split(key, 4)

    # deterministic parameter init, mirroring reset_parameters():
    # uniform(-stdv, stdv) with stdv = 1/sqrt(out_features)
    stdv = 1.0 / math.sqrt(F_out)
    weight = jax.random.uniform(k_w, (F_in, F_out), jnp.float32, -stdv, stdv)
    bias = jax.random.uniform(k_b, (F_out,), jnp.float32, -stdv, stdv)

    # node features and a (dense) row-normalized adjacency
    x = jax.random.normal(k_x, (N, F_in), jnp.float32)
    adj_raw = jax.random.uniform(k_adj, (N, N), jnp.float32)
    adj = (adj_raw > 0.9).astype(jnp.float32) + jnp.eye(N, dtype=jnp.float32)
    adj = adj / jnp.sum(adj, axis=1, keepdims=True)

    # reference in plain JAX
    ref = adj @ (x @ weight) + bias

    # 1) float32, resident-support fast path
    out = graph_convolution(x, adj, weight, bias, compute_dtype=jnp.float32)
    out = jax.block_until_ready(out)
    assert out.shape == (N, F_out)
    assert jnp.allclose(out, ref, atol=1e-3, rtol=1e-3), "f32 (resident) mismatch"

    # 2) float32, forced k-tiled accumulator path (large-graph code path)
    out_kt = graph_convolution(x, adj, weight, bias, compute_dtype=jnp.float32,
                               resident_support_bytes=0)
    out_kt = jax.block_until_ready(out_kt)
    assert out_kt.shape == (N, F_out)
    assert jnp.allclose(out_kt, ref, atol=1e-3, rtol=1e-3), "f32 (k-tiled) mismatch"

    # 3) bfloat16 compute (MXU-friendly on v6e/v7x; f32 accumulation, f32 bias)
    out_bf16 = graph_convolution(x, adj, weight, bias, compute_dtype=jnp.bfloat16)
    out_bf16 = jax.block_until_ready(out_bf16)
    assert out_bf16.shape == (N, F_out)
    assert jnp.allclose(out_bf16, ref, atol=5e-2, rtol=5e-2), "bf16 mismatch"

    print("KERNEL_OK")
</pallas_src>

<mosaic_0001>
module attributes {stable_mosaic.version = 11 : i64} {
  func.func @_mm_ktiled_kernel(%arg0: i32, %arg1: i32, %arg2: i32, %arg3: memref<128x128xf32, #tpu.memory_space<vmem>>, %arg4: memref<128x128xf32, #tpu.memory_space<vmem>>, %arg5: memref<128x128xf32, #tpu.memory_space<vmem>>, %arg6: memref<128x128xf32, #tpu.memory_space<vmem>>) attributes {dimension_semantics = [#tpu.dimension_semantics<parallel>, #tpu.dimension_semantics<parallel>, #tpu.dimension_semantics<arbitrary>], iteration_bounds = array<i64: 2, 1, 1>, scalar_prefetch = 0 : i64, scratch_operands = 1 : i64, tpu.core_type = #tpu.core_type<tc>, window_params = [{transform_indices = @transform_0, window_bounds = array<i64: 128, 128>}, {transform_indices = @transform_1, window_bounds = array<i64: 128, 128>}, {transform_indices = @transform_2, window_bounds = array<i64: 128, 128>}]} {
    %c0_i32 = arith.constant 0 : i32
    %0 = arith.cmpi eq, %arg2, %c0_i32 : i32
    %1 = arith.extui %0 : i1 to i32
    %c0_i32_0 = arith.constant 0 : i32
    %2 = arith.cmpi ne, %1, %c0_i32_0 : i32
    scf.if %2 {
      %cst_10 = arith.constant 0.000000e+00 : f32
      %12 = vector.broadcast %cst_10 : f32 to vector<128x128xf32>
      %c0_11 = arith.constant 0 : index
      %c0_12 = arith.constant 0 : index
      %13 = vector.load %arg6[%c0_11, %c0_12] : memref<128x128xf32, #tpu.memory_space<vmem>>, vector<128x128xf32>
      tpu.vector_store %arg6[%c0_11, %c0_12], %12 {strides = array<i32>} : memref<128x128xf32, #tpu.memory_space<vmem>>, vector<128x128xf32>,
    } else {
    }
    %c0 = arith.constant 0 : index
    %c0_1 = arith.constant 0 : index
    %3 = vector.load %arg3[%c0, %c0_1] : memref<128x128xf32, #tpu.memory_space<vmem>>, vector<128x128xf32>
    %c0_2 = arith.constant 0 : index
    %c0_3 = arith.constant 0 : index
    %4 = vector.load %arg4[%c0_2, %c0_3] : memref<128x128xf32, #tpu.memory_space<vmem>>, vector<128x128xf32>
    %c0_4 = arith.constant 0 : index
    %c0_5 = arith.constant 0 : index
    %5 = vector.load %arg6[%c0_4, %c0_5] : memref<128x128xf32, #tpu.memory_space<vmem>>, vector<128x128xf32>
    %cst = arith.constant dense<0.000000e+00> : vector<128x128xf32>
    %6 = tpu.matmul %3, %4, %cst {dimension_numbers = #tpu.dot_dimension_numbers<[1], [0], [0], [1], [0, 0, 1, 1], [], []>} : vector<128x128xf32>, vector<128x128xf32>, vector<128x128xf32> -> vector<128x128xf32>
    %7 = arith.addf %5, %6 : vector<128x128xf32>
    %c0_6 = arith.constant 0 : index
    %c0_7 = arith.constant 0 : index
    %8 = vector.load %arg6[%c0_6, %c0_7] : memref<128x128xf32, #tpu.memory_space<vmem>>, vector<128x128xf32>
    tpu.vector_store %arg6[%c0_6, %c0_7], %7 {strides = array<i32>} : memref<128x128xf32, #tpu.memory_space<vmem>>, vector<128x128xf32>,
    %c0_i32_8 = arith.constant 0 : i32
    %9 = arith.cmpi eq, %arg2, %c0_i32_8 : i32
    %10 = arith.extui %9 : i1 to i32
    %c0_i32_9 = arith.constant 0 : i32
    %11 = arith.cmpi ne, %10, %c0_i32_9 : i32
    scf.if %11 {
      %c0_10 = arith.constant 0 : index
      %c0_11 = arith.constant 0 : index
      %12 = vector.load %arg6[%c0_10, %c0_11] : memref<128x128xf32, #tpu.memory_space<vmem>>, vector<128x128xf32>
      %c0_12 = arith.constant 0 : index
      %c0_13 = arith.constant 0 : index
      %13 = vector.load %arg5[%c0_12, %c0_13] : memref<128x128xf32, #tpu.memory_space<vmem>>, vector<128x128xf32>
      tpu.vector_store %arg5[%c0_12, %c0_13], %12 {strides = array<i32>} : memref<128x128xf32, #tpu.memory_space<vmem>>, vector<128x128xf32>,
    } else {
    }
    return
  }
  func.func @transform_0(%arg0: i32, %arg1: i32, %arg2: i32) -> (i32, i32) {
    %c0_i32 = arith.constant 0 : i32
    return %arg0, %arg2 : i32, i32
  }
  func.func @transform_1(%arg0: i32, %arg1: i32, %arg2: i32) -> (i32, i32) {
    %c0_i32 = arith.constant 0 : i32
    return %arg2, %arg1 : i32, i32
  }
  func.func @transform_2(%arg0: i32, %arg1: i32, %arg2: i32) -> (i32, i32) {
    %c0_i32 = arith.constant 0 : i32
    return %arg0, %arg1 : i32, i32
  }
}

</mosaic_0001>

<llo_original>
// kernel: tpu_custom_call.1
$region0: #{tpu_custom_call.1}
  #allocation0 [shape = 'u32[]', space=smem, size = 0x4, offset = 0x4, fixed_abs, tag = 'smem constant byte address 0x4 - core index']
  #allocation1 [shape = 'u32[144,128]{1,0:T(1,128)}', space=vmem, size = 0x12000, scoped, tag = 'internal scratch']
  #allocation2 [shape = 'f32[128,128]{1,0:T(8,128)}', space=vmem, size = 0x10000, scoped, tag = 'scratch operand']
  %s0 = inlined_call_operand.hbm [shape: f32[256,128], index: 0, kind: input, shape index: {}]
  %s1 = inlined_call_operand.hbm [shape: f32[128,128], index: 1, kind: input, shape index: {}]
  %s2 = inlined_call_operand.hbm [shape: f32[256,128], index: 2, kind: output, shape index: {}]
  %s3 = sld [smem:[#allocation0]]
  $region57: #{tpu_custom_call.1} parent=0
    _
  %s5 = ssub.s32 1, %s3
  %s6 = scalar_select 0, %s5, %s3
  $region1: #{tpu_custom_call.1} parent=0
    #allocation3 [shape = 'u8[131072]{0}', space=vmem, size = 0x20000, scoped, tag = 'input window, operand 0']
    #allocation4 [shape = 's32[2]{0}', space=sflag, size = 0x8, scoped, tag = 'scoped memory for tpu_custom_call.1']
    #allocation5 [shape = 's32[2]{0}', space=sflag, size = 0x8, scoped, tag = 'scoped memory for tpu_custom_call.1']
    #allocation6 [shape = 'u8[65536]{0}', space=vmem, size = 0x10000, scoped, tag = 'input window, operand 1, single buffered']
    #allocation7 [shape = 's32[1]{0}', space=sflag, size = 0x4, scoped, tag = 'scoped memory for tpu_custom_call.1']
    #allocation8 [shape = 'u8[131072]{0}', space=vmem, size = 0x20000, scoped, tag = 'output window, operand 0']
    %7 = vsyncpa [#allocation4], 0
    %s8 = scalar_lea.sflag [#allocation4], 1
    %9 = vsyncpa %s8, 0
    %10 = vsyncpa [#allocation7], 0
    %11 = vsyncpa [#allocation5], 0
    %s12 = scalar_lea.sflag [#allocation5], 1
    %13 = vsyncpa %s12, 0
    loop: start=0, step=1, limit=4
    $region2: #{tpu_custom_call.1} parent=1 // loop_pre_header
      _
    $region3: #{tpu_custom_call.1} parent=1 // loop_header
      %s15 = sphi 0, %s19
      %p16 = scmp.ge.s32.totalorder %s15, 4
      %s22 = sphi 0, %s41
      %s23 = sphi 0, %s37
      %s24 = sphi 0, %s33
      %s25 = sphi 0, %s22
      %s26 = sphi 0, %s23
      %s27 = sphi 0, %s24
      %s28 = sphi 0, %s25
      %s29 = sphi 0, %s26
      %s30 = sphi 0, %s27
      %s46 = sphi 0, %s48
      %s49 = sphi 0, %s46
      %s50 = sphi 0, %s49
      %s66 = sphi 0, %s50
      %s74 = sphi 0, %s76
      %s77 = sphi 0, %s74
      %s78 = sphi 0, %s77
      %s94 = sphi 0, %s78
      %s102 = sphi 0, %s104
      %s105 = sphi 0, %s102
      %s106 = sphi 0, %s105
      %s122 = sphi 0, %s106
    $region4: #{tpu_custom_call.1} parent=1 // loop_header_branch
      %18 = sbr.rel (%p16) target = $region8
    $region5: #{tpu_custom_call.1} parent=1 // loop_body
      %s20 = ssub.s32 %s15, 1
      %s21 = ssub.s32 %s15, 2
      %s31 = sadd.s32 1, %s24
      %p32 = scmp.ge.s32.totalorder %s31, 1
      %s33 = scalar_select %p32, 0, %s31
      %s34 = sadd.s32 1, %s23
      %s35 = scalar_select %p32, %s34, %s23
      %p36 = scmp.ge.s32.totalorder %s35, 1
      %s37 = scalar_select %p36, 0, %s35
      %s38 = sadd.s32 1, %s22
      %s39 = scalar_select %p36, %s38, %s22
      %p40 = scmp.ge.s32.totalorder %s39, 2
      %s41 = scalar_select %p40, 0, %s39
      %s42 = ssub.s32 %s22, %s41
      %s43 = ssub.s32 %s24, %s33
      %s44 = sor.u32 %s42, %s43
      %p45 = scmp.eq.s32.totalorder %s44, 0
      %s47 = sadd.s32 %s46, 1
      %s48 = scalar_select %p45, %s46, %s47
      %p51 = pneg %p45
      %p52 = scmp.eq.s32.totalorder %s15, 1
      %p53 = por %p51, %p52
      %p54 = scmp.ne.s32.totalorder %s46, %s49
      %p55 = scmp.eq.s32.totalorder %s15, 0
      %p56 = por %p54, %p55
      %p57 = scmp.ne.s32.totalorder %s46, %s49
      %p58 = scmp.eq.s32.totalorder %s20, 1
      %p59 = por %p57, %p58
      %p60 = scmp.ne.s32.totalorder %s49, %s50
      %p61 = scmp.eq.s32.totalorder %s20, 0
      %p62 = por %p60, %p61
      %p63 = scmp.ne.s32.totalorder %s49, %s50
      %p64 = scmp.eq.s32.totalorder %s21, 1
      %p65 = por %p63, %p64
      %p67 = scmp.ne.s32.totalorder %s50, %s66
      %p68 = scmp.eq.s32.totalorder %s21, 0
      %p69 = por %p67, %p68
      %s70 = ssub.s32 %s24, %s33
      %s71 = ssub.s32 %s23, %s37
      %s72 = sor.u32 %s70, %s71
      %p73 = scmp.eq.s32.totalorder %s72, 0
      %s75 = sadd.s32 %s74, 1
      %s76 = scalar_select %p73, %s74, %s75
      %p79 = pneg %p73
      %p80 = scmp.eq.s32.totalorder %s15, 1
      %p81 = por %p79, %p80
      %p82 = scmp.ne.s32.totalorder %s74, %s77
      %p83 = scmp.eq.s32.totalorder %s15, 0
      %p84 = por %p82, %p83
      %p85 = scmp.ne.s32.totalorder %s74, %s77
      %p86 = scmp.eq.s32.totalorder %s20, 1
      %p87 = por %p85, %p86
      %p88 = scmp.ne.s32.totalorder %s77, %s78
      %p89 = scmp.eq.s32.totalorder %s20, 0
      %p90 = por %p88, %p89
      %p91 = scmp.ne.s32.totalorder %s77, %s78
      %p92 = scmp.eq.s32.totalorder %s21, 1
      %p93 = por %p91, %p92
      %p95 = scmp.ne.s32.totalorder %s78, %s94
      %p96 = scmp.eq.s32.totalorder %s21, 0
      %p97 = por %p95, %p96
      %s98 = ssub.s32 %s22, %s41
      %s99 = ssub.s32 %s23, %s37
      %s100 = sor.u32 %s98, %s99
      %p101 = scmp.eq.s32.totalorder %s100, 0
      %s103 = sadd.s32 %s102, 1
      %s104 = scalar_select %p101, %s102, %s103
      %p107 = pneg %p101
      %p108 = scmp.eq.s32.totalorder %s15, 1
      %p109 = por %p107, %p108
      %p110 = scmp.ne.s32.totalorder %s102, %s105
      %p111 = scmp.eq.s32.totalorder %s15, 0
      %p112 = por %p110, %p111
      %p113 = scmp.ne.s32.totalorder %s102, %s105
      %p114 = scmp.eq.s32.totalorder %s20, 1
      %p115 = por %p113, %p114
      %p116 = scmp.ne.s32.totalorder %s105, %s106
      %p117 = scmp.eq.s32.totalorder %s20, 0
      %p118 = por %p116, %p117
      %p119 = scmp.ne.s32.totalorder %s105, %s106
      %p120 = scmp.eq.s32.totalorder %s21, 1
      %p121 = por %p119, %p120
      %p123 = scmp.ne.s32.totalorder %s106, %s122
      %p124 = scmp.eq.s32.totalorder %s21, 0
      %p125 = por %p123, %p124
      %p126 = scmp.le.s32.totalorder 1, %s15
      %p127 = scmp.lt.s32.totalorder %s15, 3
      %p128 = pnand %p126, %p127
      %p129 = pneg %p128
      // Predicated region
      $region9: #{tpu_custom_call.1} parent=5 // pred_check
        _
      $region10: #{tpu_custom_call.1} parent=5 // pred_check_branch
        %131 = sbr.rel (%p128) target = $region12
      $region11: #{tpu_custom_call.1} parent=5 // pred_region
        %s132 = ssub.s32 %s15, 1
        // Predicated region
        $region13: #{tpu_custom_call.1} parent=11 // pred_check
          %p133 = pneg %p90
        $region14: #{tpu_custom_call.1} parent=11 // pred_check_branch
          %135 = sbr.rel (%p133) target = $region16
        $region15: #{tpu_custom_call.1} parent=11 // pred_region
          %s136 = smul.u32 16, %s27
          %s138 = ssub.s32 2048, 2048
          %139 = vsyncadd [#allocation7], %s138
          %s140 = sadd.s32 %s26, %s136
          %s141 = smul.addr %s140, 128
          %s142 = scalar_lea.hbm %s1, %s141
          %s143 = sshll.u32 [#allocation6], 4
          %s144 = int_to_ptr.vmem [resolvable:$true] %s143
          %149 = dma.hbm_to_vmem [thread:$0]  %s142, 2048, %s144, [#allocation7], 128, 128, 8
        $region16: #{tpu_custom_call.1} parent=11 // pred_fallthru
          _
      $region12: #{tpu_custom_call.1} parent=5 // pred_fallthru
        _
      %p150 = scmp.lt.s32.totalorder %s15, 2
      // Predicated region
      $region17: #{tpu_custom_call.1} parent=5 // pred_check
        %p151 = pneg %p150
      $region18: #{tpu_custom_call.1} parent=5 // pred_check_branch
        %153 = sbr.rel (%p151) target = $region20
      $region19: #{tpu_custom_call.1} parent=5 // pred_region
        // Predicated region
        $region21: #{tpu_custom_call.1} parent=19 // pred_check
          %p154 = pneg %p56
        $region22: #{tpu_custom_call.1} parent=19 // pred_check_branch
          %156 = sbr.rel (%p154) target = $region24
        $region23: #{tpu_custom_call.1} parent=19 // pred_region
          %s157 = sand.u32 %s46, 1
          %s158 = scalar_lea.sflag [#allocation4], %s157
          %s159 = sand.u32 %s46, 1
          %s160 = smul.addr %s159, 128
          %s161 = scalar_lea.vmem [#allocation3], %s160
          %s162 = smul.u32 16, %s22
          %s164 = ssub.s32 2048, 2048
          %165 = vsyncadd %s158, %s164
          %s166 = sadd.s32 %s24, %s162
          %s167 = smul.addr %s166, 128
          %s168 = scalar_lea.hbm %s0, %s167
          %s169 = sshll.u32 %s161, 4
          %s170 = int_to_ptr.vmem [resolvable:$true] %s169
          %175 = dma.hbm_to_vmem [thread:$0]  %s168, 2048, %s170, %s158, 128, 128, 8
        $region24: #{tpu_custom_call.1} parent=19 // pred_fallthru
          _
      $region20: #{tpu_custom_call.1} parent=5 // pred_fallthru
        _
      %p176 = scmp.le.s32.totalorder 1, %s15
      %p177 = scmp.lt.s32.totalorder %s15, 3
      %p178 = pnand %p176, %p177
      %p179 = pneg %p178
      // Predicated region
      $region25: #{tpu_custom_call.1} parent=5 // pred_check
        _
      $region26: #{tpu_custom_call.1} parent=5 // pred_check_branch
        %181 = sbr.rel (%p178) target = $region28
      $region27: #{tpu_custom_call.1} parent=5 // pred_region
        %s182 = ssub.s32 %s15, 1
        %s183 = sand.u32 %s49, 1
        %s184 = scalar_lea.sflag [#allocation4], %s183
        %s185 = sand.u32 %s49, 1
        %s186 = smul.addr %s185, 128
        %s187 = scalar_lea.vmem [#allocation3], %s186
        // Predicated region
        $region29: #{tpu_custom_call.1} parent=27 // pred_check
          %p188 = pneg %p62
        $region30: #{tpu_custom_call.1} parent=27 // pred_check_branch
          %190 = sbr.rel (%p188) target = $region32
        $region31: #{tpu_custom_call.1} parent=27 // pred_region
          %191 = dma.done %s184, 2048
        $region32: #{tpu_custom_call.1} parent=27 // pred_fallthru
          _
        // Predicated region
        $region33: #{tpu_custom_call.1} parent=27 // pred_check
          %p192 = pneg %p90
        $region34: #{tpu_custom_call.1} parent=27 // pred_check_branch
          %194 = sbr.rel (%p192) target = $region36
        $region35: #{tpu_custom_call.1} parent=27 // pred_region
          %195 = dma.done [#allocation7], 2048
        $region36: #{tpu_custom_call.1} parent=27 // pred_fallthru
          _
        %s196 = sand.u32 %s49, 1
        %s197 = scalar_lea.sflag [#allocation4], %s196
        %s198 = sand.u32 %s49, 1
        %s199 = smul.addr %s198, 128
        %s200 = scalar_lea.vmem [#allocation3], %s199
        %p201 = pneg %p62
        %p202 = pneg %p59
        %p203 = pneg %p90
        %p204 = pneg %p87
        %p205 = pneg %p118
        %p206 = pneg %p115
        %s207 = sand.u32 %s105, 1
        %s208 = scalar_lea.sflag [#allocation5], %s207
        %s209 = sand.u32 %s105, 1
        %s210 = smul.addr %s209, 128
        %s211 = scalar_lea.vmem [#allocation8], %s210
        %s212 = smul.u32 16, %s25
        %s213 = smul.u32 16, %s27
        %s214 = smul.u32 16, %s25
        %p215 = scmp.eq.s32.totalorder %s27, 0
        // Predicated region
        $region37: #{tpu_custom_call.1} parent=27 // pred_check
          %p216 = pneg %p215
        $region38: #{tpu_custom_call.1} parent=27 // pred_check_branch
          %218 = sbr.rel (%p216) target = $region40
        $region39: #{tpu_custom_call.1} parent=27 // pred_region
          %219 = vst [vmem:[#allocation2] sm:$0xff] 0.0
          %220 = vst [vmem:[#allocation2 + $0x8] sm:$0xff] 0.0
          %221 = vst [vmem:[#allocation2 + $0x10] sm:$0xff] 0.0
          %222 = vst [vmem:[#allocation2 + $0x18] sm:$0xff] 0.0
          %223 = vst [vmem:[#allocation2 + $0x20] sm:$0xff] 0.0
          %224 = vst [vmem:[#allocation2 + $0x28] sm:$0xff] 0.0
          %225 = vst [vmem:[#allocation2 + $0x30] sm:$0xff] 0.0
          %226 = vst [vmem:[#allocation2 + $0x38] sm:$0xff] 0.0
          %227 = vst [vmem:[#allocation2 + $0x40] sm:$0xff] 0.0
          %228 = vst [vmem:[#allocation2 + $0x48] sm:$0xff] 0.0
          %229 = vst [vmem:[#allocation2 + $0x50] sm:$0xff] 0.0
          %230 = vst [vmem:[#allocation2 + $0x58] sm:$0xff] 0.0
          %231 = vst [vmem:[#allocation2 + $0x60] sm:$0xff] 0.0
          %232 = vst [vmem:[#allocation2 + $0x68] sm:$0xff] 0.0
          %233 = vst [vmem:[#allocation2 + $0x70] sm:$0xff] 0.0
          %234 = vst [vmem:[#allocation2 + $0x78] sm:$0xff] 0.0
        $region40: #{tpu_custom_call.1} parent=27 // pred_fallthru
          _
        %v235 = vld [vmem:[%s187] sm:$0xff]
        %v236 = vld [vmem:[%s187 + $0x8] sm:$0xff]
        %v237 = vld [vmem:[%s187 + $0x10] sm:$0xff]
        %v238 = vld [vmem:[%s187 + $0x18] sm:$0xff]
        %v239 = vld [vmem:[%s187 + $0x20] sm:$0xff]
        %v240 = vld [vmem:[%s187 + $0x28] sm:$0xff]
        %v241 = vld [vmem:[%s187 + $0x30] sm:$0xff]
        %v242 = vld [vmem:[%s187 + $0x38] sm:$0xff]
        %v243 = vld [vmem:[%s187 + $0x40] sm:$0xff]
        %v244 = vld [vmem:[%s187 + $0x48] sm:$0xff]
        %v245 = vld [vmem:[%s187 + $0x50] sm:$0xff]
        %v246 = vld [vmem:[%s187 + $0x58] sm:$0xff]
        %v247 = vld [vmem:[%s187 + $0x60] sm:$0xff]
        %v248 = vld [vmem:[%s187 + $0x68] sm:$0xff]
        %v249 = vld [vmem:[%s187 + $0x70] sm:$0xff]
        %v250 = vld [vmem:[%s187 + $0x78] sm:$0xff]
        %v251 = vld [vmem:[#allocation6] sm:$0xff]
        %v252 = vld [vmem:[#allocation6 + $0x8] sm:$0xff]
        %v253 = vld [vmem:[#allocation6 + $0x10] sm:$0xff]
        %v254 = vld [vmem:[#allocation6 + $0x18] sm:$0xff]
        %v255 = vld [vmem:[#allocation6 + $0x20] sm:$0xff]
        %v256 = vld [vmem:[#allocation6 + $0x28] sm:$0xff]
        %v257 = vld [vmem:[#allocation6 + $0x30] sm:$0xff]
        %v258 = vld [vmem:[#allocation6 + $0x38] sm:$0xff]
        %v259 = vld [vmem:[#allocation6 + $0x40] sm:$0xff]
        %v260 = vld [vmem:[#allocation6 + $0x48] sm:$0xff]
        %v261 = vld [vmem:[#allocation6 + $0x50] sm:$0xff]
        %v262 = vld [vmem:[#allocation6 + $0x58] sm:$0xff]
        %v263 = vld [vmem:[#allocation6 + $0x60] sm:$0xff]
        %v264 = vld [vmem:[#allocation6 + $0x68] sm:$0xff]
        %v265 = vld [vmem:[#allocation6 + $0x70] sm:$0xff]
        %v266 = vld [vmem:[#allocation6 + $0x78] sm:$0xff]
        %v267 = vld [vmem:[#allocation2] sm:$0xff]
        %v268 = vld [vmem:[#allocation2 + $0x8] sm:$0xff]
        %v269 = vld [vmem:[#allocation2 + $0x10] sm:$0xff]
        %v270 = vld [vmem:[#allocation2 + $0x18] sm:$0xff]
        %v271 = vld [vmem:[#allocation2 + $0x20] sm:$0xff]
        %v272 = vld [vmem:[#allocation2 + $0x28] sm:$0xff]
        %v273 = vld [vmem:[#allocation2 + $0x30] sm:$0xff]
        %v274 = vld [vmem:[#allocation2 + $0x38] sm:$0xff]
        %v275 = vld [vmem:[#allocation2 + $0x40] sm:$0xff]
        %v276 = vld [vmem:[#allocation2 + $0x48] sm:$0xff]
        %v277 = vld [vmem:[#allocation2 + $0x50] sm:$0xff]
        %v278 = vld [vmem:[#allocation2 + $0x58] sm:$0xff]
        %v279 = vld [vmem:[#allocation2 + $0x60] sm:$0xff]
        %v280 = vld [vmem:[#allocation2 + $0x68] sm:$0xff]
        %v281 = vld [vmem:[#allocation2 + $0x70] sm:$0xff]
        %v282 = vld [vmem:[#allocation2 + $0x78] sm:$0xff]
        %283 = vmatprep.subr.mxu0 0.0
        %284 = vmatpush1.msra.mxu0 %v266
        %285 = vmatprep.subr.mxu0 0.0
        %286 = vmatpush1.msra.mxu0 %v265
        %287 = vmatprep.subr.mxu0 0.0
        %288 = vmatpush1.msra.mxu0 %v264
        %289 = vmatprep.subr.mxu0 0.0
        %290 = vmatpush1.msra.mxu0 %v263
        %291 = vmatprep.subr.mxu0 0.0
        %292 = vmatpush1.msra.mxu0 %v262
        %293 = vmatprep.subr.mxu0 0.0
        %294 = vmatpush1.msra.mxu0 %v261
        %295 = vmatprep.subr.mxu0 0.0
        %296 = vmatpush1.msra.mxu0 %v260
        %297 = vmatprep.subr.mxu0 0.0
        %298 = vmatpush1.msra.mxu0 %v259
        %299 = vmatprep.subr.mxu0 0.0
        %300 = vmatpush1.msra.mxu0 %v258
        %301 = vmatprep.subr.mxu0 0.0
        %302 = vmatpush1.msra.mxu0 %v257
        %303 = vmatprep.subr.mxu0 0.0
        %304 = vmatpush1.msra.mxu0 %v256
        %305 = vmatprep.subr.mxu0 0.0
        %306 = vmatpush1.msra.mxu0 %v255
        %307 = vmatprep.subr.mxu0 0.0
        %308 = vmatpush1.msra.mxu0 %v254
        %309 = vmatprep.subr.mxu0 0.0
        %310 = vmatpush1.msra.mxu0 %v253
        %311 = vmatprep.subr.mxu0 0.0
        %312 = vmatpush1.msra.mxu0 %v252
        %313 = vmatprep.subr.mxu0 0.0
        %314 = vmatpush1.msra.mxu0 %v251
        %315 = vmatprep.subr.mxu0 0.0
        %316 = vmatpush2.msra.mxu0 0.0
        %317 = vmatprep.subr.mxu0 0.0
        %318 = vmatpush2.msra.mxu0 0.0
        %319 = vmatprep.subr.mxu0 0.0
        %320 = vmatpush2.msra.mxu0 0.0
        %321 = vmatprep.subr.mxu0 0.0
        %322 = vmatpush2.msra.mxu0 0.0
        %323 = vmatprep.subr.mxu0 0.0
        %324 = vmatpush2.msra.mxu0 0.0
        %325 = vmatprep.subr.mxu0 0.0
        %326 = vmatpush2.msra.mxu0 0.0
        %327 = vmatprep.subr.mxu0 0.0
        %328 = vmatpush2.msra.mxu0 0.0
        %329 = vmatprep.subr.mxu0 0.0
        %330 = vmatpush2.msra.mxu0 0.0
        %331 = vmatprep.subr.mxu0 0.0
        %332 = vmatpush2.msra.mxu0 0.0
        %333 = vmatprep.subr.mxu0 0.0
        %334 = vmatpush2.msra.mxu0 0.0
        %335 = vmatprep.subr.mxu0 0.0
        %336 = vmatpush2.msra.mxu0 0.0
        %337 = vmatprep.subr.mxu0 0.0
        %338 = vmatpush2.msra.mxu0 0.0
        %339 = vmatprep.subr.mxu0 0.0
        %340 = vmatpush2.msra.mxu0 0.0
        %341 = vmatprep.subr.mxu0 0.0
        %342 = vmatpush2.msra.mxu0 0.0
        %343 = vmatprep.subr.mxu0 0.0
        %344 = vmatpush2.msra.mxu0 0.0
        %345 = vmatprep.subr.mxu0 0.0
        %346 = vmatpush2.msra.mxu0 0.0
        %347 = vmatprep.mubr.f32.mxu0 0.0
        %348 = vmatmul.mubr.f32.gmra.mxu0 %v235
        %v349 = vpop.f32.mrf.mxu0
        %v350 = vadd.f32 0.0, %v349
        %v351 = vpop.f32.mrf.mxu0
        %352 = vmatprep.mubr.f32.mxu0 0.0
        %353 = vmatmul.mubr.f32.gmra.mxu0 %v236
        %v354 = vpop.f32.mrf.mxu0
        %v355 = vadd.f32 0.0, %v354
        %v356 = vpop.f32.mrf.mxu0
        %357 = vmatprep.mubr.f32.mxu0 0.0
        %358 = vmatmul.mubr.f32.gmra.mxu0 %v237
        %v359 = vpop.f32.mrf.mxu0
        %v360 = vadd.f32 0.0, %v359
        %v361 = vpop.f32.mrf.mxu0
        %362 = vmatprep.mubr.f32.mxu0 0.0
        %363 = vmatmul.mubr.f32.gmra.mxu0 %v238
        %v364 = vpop.f32.mrf.mxu0
        %v365 = vadd.f32 0.0, %v364
        %v366 = vpop.f32.mrf.mxu0
        %367 = vmatprep.mubr.f32.mxu0 0.0
        %368 = vmatmul.mubr.f32.gmra.mxu0 %v239
        %v369 = vpop.f32.mrf.mxu0
        %v370 = vadd.f32 0.0, %v369
        %v371 = vpop.f32.mrf.mxu0
        %372 = vmatprep.mubr.f32.mxu0 0.0
        %373 = vmatmul.mubr.f32.gmra.mxu0 %v240
        %v374 = vpop.f32.mrf.mxu0
        %v375 = vadd.f32 0.0, %v374
        %v376 = vpop.f32.mrf.mxu0
        %377 = vmatprep.mubr.f32.mxu0 0.0
        %378 = vmatmul.mubr.f32.gmra.mxu0 %v241
        %v379 = vpop.f32.mrf.mxu0
        %v380 = vadd.f32 0.0, %v379
        %v381 = vpop.f32.mrf.mxu0
        %382 = vmatprep.mubr.f32.mxu0 0.0
        %383 = vmatmul.mubr.f32.gmra.mxu0 %v242
        %v384 = vpop.f32.mrf.mxu0
        %v385 = vadd.f32 0.0, %v384
        %v386 = vpop.f32.mrf.mxu0
        %387 = vmatprep.mubr.f32.mxu0 0.0
        %388 = vmatmul.mubr.f32.gmra.mxu0 %v243
        %v389 = vpop.f32.mrf.mxu0
        %v390 = vadd.f32 0.0, %v389
        %v391 = vpop.f32.mrf.mxu0
        %392 = vmatprep.mubr.f32.mxu0 0.0
        %393 = vmatmul.mubr.f32.gmra.mxu0 %v244
        %v394 = vpop.f32.mrf.mxu0
        %v395 = vadd.f32 0.0, %v394
        %v396 = vpop.f32.mrf.mxu0
        %397 = vmatprep.mubr.f32.mxu0 0.0
        %398 = vmatmul.mubr.f32.gmra.mxu0 %v245
        %v399 = vpop.f32.mrf.mxu0
        %v400 = vadd.f32 0.0, %v399
        %v401 = vpop.f32.mrf.mxu0
        %402 = vmatprep.mubr.f32.mxu0 0.0
        %403 = vmatmul.mubr.f32.gmra.mxu0 %v246
        %v404 = vpop.f32.mrf.mxu0
        %v405 = vadd.f32 0.0, %v404
        %v406 = vpop.f32.mrf.mxu0
        %407 = vmatprep.mubr.f32.mxu0 0.0
        %408 = vmatmul.mubr.f32.gmra.mxu0 %v247
        %v409 = vpop.f32.mrf.mxu0
        %v410 = vadd.f32 0.0, %v409
        %v411 = vpop.f32.mrf.mxu0
        %412 = vmatprep.mubr.f32.mxu0 0.0
        %413 = vmatmul.mubr.f32.gmra.mxu0 %v248
        %v414 = vpop.f32.mrf.mxu0
        %v415 = vadd.f32 0.0, %v414
        %v416 = vpop.f32.mrf.mxu0
        %417 = vmatprep.mubr.f32.mxu0 0.0
        %418 = vmatmul.mubr.f32.gmra.mxu0 %v249
        %v419 = vpop.f32.mrf.mxu0
        %v420 = vadd.f32 0.0, %v419
        %v421 = vpop.f32.mrf.mxu0
        %422 = vmatprep.mubr.f32.mxu0 0.0
        %423 = vmatmul.mubr.f32.gmra.mxu0 %v250
        %v424 = vpop.f32.mrf.mxu0
        %v425 = vadd.f32 0.0, %v424
        %v426 = vpop.f32.mrf.mxu0
        %427 = vdwg.mxu0
        %v428 = vadd.f32 %v267, %v350
        %v429 = vadd.f32 %v268, %v355
        %v430 = vadd.f32 %v269, %v360
        %v431 = vadd.f32 %v270, %v365
        %v432 = vadd.f32 %v271, %v370
        %v433 = vadd.f32 %v272, %v375
        %v434 = vadd.f32 %v273, %v380
        %v435 = vadd.f32 %v274, %v385
        %v436 = vadd.f32 %v275, %v390
        %v437 = vadd.f32 %v276, %v395
        %v438 = vadd.f32 %v277, %v400
        %v439 = vadd.f32 %v278, %v405
        %v440 = vadd.f32 %v279, %v410
        %v441 = vadd.f32 %v280, %v415
        %v442 = vadd.f32 %v281, %v420
        %v443 = vadd.f32 %v282, %v425
        %444 = vst [vmem:[#allocation2] sm:$0xff] %v428
        %445 = vst [vmem:[#allocation2 + $0x8] sm:$0xff] %v429
        %446 = vst [vmem:[#allocation2 + $0x10] sm:$0xff] %v430
        %447 = vst [vmem:[#allocation2 + $0x18] sm:$0xff] %v431
        %448 = vst [vmem:[#allocation2 + $0x20] sm:$0xff] %v432
        %449 = vst [vmem:[#allocation2 + $0x28] sm:$0xff] %v433
        %450 = vst [vmem:[#allocation2 + $0x30] sm:$0xff] %v434
        %451 = vst [vmem:[#allocation2 + $0x38] sm:$0xff] %v435
        %452 = vst [vmem:[#allocation2 + $0x40] sm:$0xff] %v436
        %453 = vst [vmem:[#allocation2 + $0x48] sm:$0xff] %v437
        %454 = vst [vmem:[#allocation2 + $0x50] sm:$0xff] %v438
        %455 = vst [vmem:[#allocation2 + $0x58] sm:$0xff] %v439
        %456 = vst [vmem:[#allocation2 + $0x60] sm:$0xff] %v440
        %457 = vst [vmem:[#allocation2 + $0x68] sm:$0xff] %v441
        %458 = vst [vmem:[#allocation2 + $0x70] sm:$0xff] %v442
        %459 = vst [vmem:[#allocation2 + $0x78] sm:$0xff] %v443
        // Predicated region
        $region41: #{tpu_custom_call.1} parent=27 // pred_check
          %p460 = pneg %p215
        $region42: #{tpu_custom_call.1} parent=27 // pred_check_branch
          %462 = sbr.rel (%p460) target = $region44
        $region43: #{tpu_custom_call.1} parent=27 // pred_region
          %v463 = vld [vmem:[#allocation2] sm:$0xff]
          %v464 = vld [vmem:[#allocation2 + $0x8] sm:$0xff]
          %v465 = vld [vmem:[#allocation2 + $0x10] sm:$0xff]
          %v466 = vld [vmem:[#allocation2 + $0x18] sm:$0xff]
          %v467 = vld [vmem:[#allocation2 + $0x20] sm:$0xff]
          %v468 = vld [vmem:[#allocation2 + $0x28] sm:$0xff]
          %v469 = vld [vmem:[#allocation2 + $0x30] sm:$0xff]
          %v470 = vld [vmem:[#allocation2 + $0x38] sm:$0xff]
          %v471 = vld [vmem:[#allocation2 + $0x40] sm:$0xff]
          %v472 = vld [vmem:[#allocation2 + $0x48] sm:$0xff]
          %v473 = vld [vmem:[#allocation2 + $0x50] sm:$0xff]
          %v474 = vld [vmem:[#allocation2 + $0x58] sm:$0xff]
          %v475 = vld [vmem:[#allocation2 + $0x60] sm:$0xff]
          %v476 = vld [vmem:[#allocation2 + $0x68] sm:$0xff]
          %v477 = vld [vmem:[#allocation2 + $0x70] sm:$0xff]
          %v478 = vld [vmem:[#allocation2 + $0x78] sm:$0xff]
          %479 = vst [vmem:[%s211] sm:$0xff] %v463
          %480 = vst [vmem:[%s211 + $0x8] sm:$0xff] %v464
          %481 = vst [vmem:[%s211 + $0x10] sm:$0xff] %v465
          %482 = vst [vmem:[%s211 + $0x18] sm:$0xff] %v466
          %483 = vst [vmem:[%s211 + $0x20] sm:$0xff] %v467
          %484 = vst [vmem:[%s211 + $0x28] sm:$0xff] %v468
          %485 = vst [vmem:[%s211 + $0x30] sm:$0xff] %v469
          %486 = vst [vmem:[%s211 + $0x38] sm:$0xff] %v470
          %487 = vst [vmem:[%s211 + $0x40] sm:$0xff] %v471
          %488 = vst [vmem:[%s211 + $0x48] sm:$0xff] %v472
          %489 = vst [vmem:[%s211 + $0x50] sm:$0xff] %v473
          %490 = vst [vmem:[%s211 + $0x58] sm:$0xff] %v474
          %491 = vst [vmem:[%s211 + $0x60] sm:$0xff] %v475
          %492 = vst [vmem:[%s211 + $0x68] sm:$0xff] %v476
          %493 = vst [vmem:[%s211 + $0x70] sm:$0xff] %v477
          %494 = vst [vmem:[%s211 + $0x78] sm:$0xff] %v478
        $region44: #{tpu_custom_call.1} parent=27 // pred_fallthru
          _
        %s495 = sand.u32 %s105, 1
        %s496 = scalar_lea.sflag [#allocation5], %s495
        %s497 = sand.u32 %s105, 1
        %s498 = smul.addr %s497, 128
        %s499 = scalar_lea.vmem [#allocation8], %s498
        // Predicated region
        $region45: #{tpu_custom_call.1} parent=27 // pred_check
          %p500 = pneg %p115
        $region46: #{tpu_custom_call.1} parent=27 // pred_check_branch
          %502 = sbr.rel (%p500) target = $region48
        $region47: #{tpu_custom_call.1} parent=27 // pred_region
          %s503 = smul.u32 16, %s25
          %s505 = ssub.s32 2048, 2048
          %506 = vsyncadd %s496, %s505
          %s507 = sadd.s32 %s26, %s503
          %s508 = smul.addr %s507, 128
          %s509 = scalar_lea.hbm %s2, %s508
          %s510 = sshll.u32 %s499, 4
          %s511 = int_to_ptr.vmem [resolvable:$true] %s510
          %516 = dma.vmem_to_hbm [thread:$0]  %s511, 2048, %s509, %s496, 128, 128, 8
        $region48: #{tpu_custom_call.1} parent=27 // pred_fallthru
          _
      $region28: #{tpu_custom_call.1} parent=5 // pred_fallthru
        _
      %p517 = scmp.le.s32.totalorder 2, %s15
      // Predicated region
      $region49: #{tpu_custom_call.1} parent=5 // pred_check
        %p518 = pneg %p517
      $region50: #{tpu_custom_call.1} parent=5 // pred_check_branch
        %520 = sbr.rel (%p518) target = $region52
      $region51: #{tpu_custom_call.1} parent=5 // pred_region
        %s521 = ssub.s32 %s15, 2
        // Predicated region
        $region53: #{tpu_custom_call.1} parent=51 // pred_check
          %p522 = pneg %p121
        $region54: #{tpu_custom_call.1} parent=51 // pred_check_branch
          %524 = sbr.rel (%p522) target = $region56
        $region55: #{tpu_custom_call.1} parent=51 // pred_region
          %s525 = sand.u32 %s106, 1
          %s526 = scalar_lea.sflag [#allocation5], %s525
          %s527 = sand.u32 %s106, 1
          %s528 = smul.addr %s527, 128
          %s529 = scalar_lea.vmem [#allocation8], %s528
          %530 = dma.done %s526, 2048
        $region56: #{tpu_custom_call.1} parent=51 // pred_fallthru
          _
      $region52: #{tpu_custom_call.1} parent=5 // pred_fallthru
        _
    $region6: #{tpu_custom_call.1} parent=1 // loop_footer
      %s19 = sadd.s32 1, %s15
    $region7: #{tpu_custom_call.1} parent=1 // loop_footer_branch
      %14 = sbr.rel target = $region3
    $region8: #{tpu_custom_call.1} parent=1 // loop_exit
      _
    %531 = vsyncpa [#allocation4], 1
    %s532 = scalar_lea.sflag [#allocation4], 1
    %533 = vsyncpa %s532, 1
    %534 = vsyncpa [#allocation7], 1
    %535 = vsyncpa [#allocation5], 1
    %s536 = scalar_lea.sflag [#allocation5], 1
    %537 = vsyncpa %s536, 1

</llo_original>
